<compile_context>
chip_gen: v7x
topology: tpu7x:2x2x1
jax: 0.10.0
libtpu: 0.0.40
codegen_flags: <defaults>
</compile_context>

<pallas_src>
import functools

import jax
import jax.numpy as jnp
from jax.experimental import pallas as pl
from jax.experimental.pallas import tpu as pltpu

HIDDEN = 128      # fixed by the PyTorch module
OUT_LANES = 128   # lane-dense probs slab width (action_dim + zero pad)


def _round_up(x, m):
    return ((x + m - 1) // m) * m


# ------------------------------------------------------------------ kernel --
def actor_critic_kernel(x_ref, w1_ref, b1_ref, wh_ref, bh_ref, wo_ref, bo_ref,
                        probs_ref, value_ref, *, action_dim):
    # shared trunk: Linear(input_dim -> 128) + ReLU   (bf16 MXU, f32 accumulate)
    x = x_ref[...].astype(jnp.bfloat16)                            # (TB, K)
    h = jnp.dot(x, w1_ref[...], preferred_element_type=jnp.float32) + b1_ref[...]
    h = jnp.maximum(h, 0.0)                                        # (TB, 128) f32

    # fused actor/critic hidden layers: one 128 -> 256 matmul + ReLU
    #   columns 0..127 -> actor hidden, 128..255 -> critic hidden
    hh = jnp.dot(h.astype(jnp.bfloat16), wh_ref[...],
                 preferred_element_type=jnp.float32) + bh_ref[...]
    hh = jnp.maximum(hh, 0.0)                                      # (TB, 256) f32

    # fused final projections via block-diagonal 256 -> 128 weight:
    #   lanes 0..A-1 = actor logits, lane A = critic value, rest ~0
    combined = jnp.dot(hh.astype(jnp.bfloat16), wo_ref[...],
                       preferred_element_type=jnp.float32) + bo_ref[...]

    lane = jax.lax.broadcasted_iota(jnp.int32, combined.shape, 1)
    logits = jnp.where(lane < action_dim, combined, jnp.float32(-1e30))
    m = jnp.max(logits, axis=-1, keepdims=True)
    e = jnp.exp(logits - m)                          # exactly 0 on masked lanes
    probs = e / jnp.sum(e, axis=-1, keepdims=True)   # exact normalization

    probs_ref[...] = probs.astype(probs_ref.dtype)              # bf16 lane-dense slab
    value_ref[...] = combined[:, action_dim:action_dim + 1]     # f32 value column


# ----------------------------------------------------------------- wrapper --
def pack_params(p, input_dim, action_dim):
    """Pack per-layer weights into the fused bf16 layout the kernel uses."""
    assert action_dim + 1 <= OUT_LANES, "action_dim + 1 must fit in 128 lanes"

    w1 = p["w1"].astype(jnp.bfloat16)                              # (K, 128)
    b1 = p["b1"]                                                   # (1, 128) f32

    wh = jnp.concatenate([p["aw1"], p["cw1"]], axis=1).astype(jnp.bfloat16)  # (128, 256)
    bh = jnp.concatenate([p["ab1"], p["cb1"]], axis=1)             # (1, 256) f32

    wo = jnp.zeros((2 * HIDDEN, OUT_LANES), jnp.float32)
    wo = wo.at[:HIDDEN, :action_dim].set(p["aw2"])                 # actor logits
    wo = wo.at[HIDDEN:, action_dim].set(p["cw2"][:, 0])            # critic value
    wo = wo.astype(jnp.bfloat16)
    bo = jnp.zeros((1, OUT_LANES), jnp.float32)
    bo = bo.at[0, :action_dim].set(p["ab2"][0])
    bo = bo.at[0, action_dim].set(p["cb2"][0, 0])

    return dict(w1=w1, b1=b1, wh=wh, bh=bh, wo=wo, bo=bo)


def _choose_tile_b(batch, input_dim, tile_b):
    """Pick a batch tile: big (amortize per-step overhead), VMEM-safe, and
    giving >= 2 grid steps when possible so v7x's two TensorCores share work."""
    q = 16  # sublane quantum that also covers bf16 (packed) outputs
    # Double-buffered x / probs / value tiles must stay well under v5e's
    # 16 MiB default scoped VMEM limit (weights are only a few hundred KB).
    row_bytes = 2 * (input_dim * 4 + OUT_LANES * 2 + 4)
    max_rows = max(q, (10 * (1 << 20)) // row_bytes // q * q)
    tile_b = min(tile_b, max_rows)
    if batch < 2 * q:
        return batch                              # single full-extent block
    if batch <= tile_b:
        return _round_up(pl.cdiv(batch, 2), q)    # >= 2 grid steps (v7x megacore)
    return _round_up(tile_b, q)


def _vmem_limit_bytes(tile_b, input_dim):
    """Only override the scoped-VMEM limit when the tiles/weights need it."""
    weight_bytes = 2 * ((input_dim * HIDDEN + HIDDEN * 2 * HIDDEN
                         + 2 * HIDDEN * OUT_LANES) * 2
                        + (HIDDEN + 2 * HIDDEN + OUT_LANES) * 4)
    tile_bytes = 2 * tile_b * (input_dim * 4 + OUT_LANES * 2 + 4)
    est = weight_bytes + tile_bytes + (1 << 20)   # + compiler scratch margin
    if est <= 12 * (1 << 20):
        return None                               # defaults suffice on all gens
    return min(int(est * 1.25), 48 * (1 << 20))   # stays under v7x's 64 MiB physical


def actor_critic_forward(x, packed, action_dim, *, tile_b=2048):
    """x: (batch, input_dim) float32. packed: output of pack_params."""
    batch, input_dim = x.shape
    assert packed["w1"].shape[0] == input_dim

    tb = _choose_tile_b(batch, input_dim, tile_b)
    grid = (pl.cdiv(batch, tb),)        # ragged last block handled by Pallas
    const = lambda i: (0, 0)            # weights: same block every step -> resident

    probs_slab, value = pl.pallas_call(
        functools.partial(actor_critic_kernel, action_dim=action_dim),
        out_shape=(jax.ShapeDtypeStruct((batch, OUT_LANES), jnp.bfloat16),
                   jax.ShapeDtypeStruct((batch, 1), jnp.float32)),
        grid=grid,
        in_specs=[
            pl.BlockSpec((tb, input_dim), lambda i: (i, 0)),       # x tile (full-K block)
            pl.BlockSpec((input_dim, HIDDEN), const),              # w1 (bf16)
            pl.BlockSpec((1, HIDDEN), const),                      # b1
            pl.BlockSpec((HIDDEN, 2 * HIDDEN), const),             # fused head W (bf16)
            pl.BlockSpec((1, 2 * HIDDEN), const),                  # fused head b
            pl.BlockSpec((2 * HIDDEN, OUT_LANES), const),          # fused out W (bf16)
            pl.BlockSpec((1, OUT_LANES), const),                   # fused out b
        ],
        out_specs=(pl.BlockSpec((tb, OUT_LANES), lambda i: (i, 0)),
                   pl.BlockSpec((tb, 1), lambda i: (i, 0))),
        compiler_params=pltpu.CompilerParams(
            dimension_semantics=("parallel",),
            vmem_limit_bytes=_vmem_limit_bytes(tb, input_dim)),
    )(x, packed["w1"], packed["b1"], packed["wh"], packed["bh"],
      packed["wo"], packed["bo"])

    probs = probs_slab[:, :action_dim].astype(jnp.float32)
    return probs, value


# ------------------------------------------------------------------- setup --
def init_params(key, input_dim, action_dim):
    """Deterministic synthetic init (shapes match the PyTorch module)."""
    ks = jax.random.split(key, 10)

    def lin(kw, kb, fan_in, fan_out):
        bound = 1.0 / jnp.sqrt(fan_in)
        w = jax.random.uniform(kw, (fan_in, fan_out), jnp.float32, -bound, bound)
        b = jax.random.uniform(kb, (1, fan_out), jnp.float32, -bound, bound)
        return w, b

    w1, b1 = lin(ks[0], ks[1], input_dim, HIDDEN)
    aw1, ab1 = lin(ks[2], ks[3], HIDDEN, HIDDEN)
    aw2, ab2 = lin(ks[4], ks[5], HIDDEN, action_dim)
    cw1, cb1 = lin(ks[6], ks[7], HIDDEN, HIDDEN)
    cw2, cb2 = lin(ks[8], ks[9], HIDDEN, 1)
    return dict(w1=w1, b1=b1, aw1=aw1, ab1=ab1, aw2=aw2, ab2=ab2,
                cw1=cw1, cb1=cb1, cw2=cw2, cb2=cb2)


def reference_forward(x, p):
    """Pure-JAX f32 reference mirroring the PyTorch forward exactly."""
    h = jnp.maximum(x @ p["w1"] + p["b1"], 0.0)
    ah = jnp.maximum(h @ p["aw1"] + p["ab1"], 0.0)
    logits = ah @ p["aw2"] + p["ab2"]
    probs = jax.nn.softmax(logits, axis=-1)
    ch = jnp.maximum(h @ p["cw1"] + p["cb1"], 0.0)
    value = ch @ p["cw2"] + p["cb2"]
    return probs, value


if __name__ == "__main__":
    key = jax.random.PRNGKey(0)
    k_x, k_p = jax.random.split(key)

    batch, input_dim, action_dim = 32, 24, 6
    x = jax.random.normal(k_x, (batch, input_dim), jnp.float32)
    params = init_params(k_p, input_dim, action_dim)
    packed = pack_params(params, input_dim, action_dim)

    probs, value = actor_critic_forward(x, packed, action_dim)
    jax.block_until_ready((probs, value))

    ref_probs, ref_value = reference_forward(x, params)
    assert probs.shape == (batch, action_dim)
    assert value.shape == (batch, 1)
    # Tolerances account for bf16 MXU operands (f32 accumulation) + bf16 probs slab.
    assert jnp.allclose(probs, ref_probs, atol=2e-2, rtol=2e-2)
    assert jnp.allclose(value, ref_value, atol=5e-2, rtol=5e-2)
    assert jnp.allclose(jnp.sum(probs, axis=-1), 1.0, atol=2e-2)

    print("KERNEL_OK")
</pallas_src>

<mosaic_0001>
module attributes {stable_mosaic.version = 11 : i64} {
  func.func @actor_critic_kernel(%arg0: i32, %arg1: memref<16x24xf32, #tpu.memory_space<vmem>>, %arg2: memref<24x128xbf16, #tpu.memory_space<vmem>>, %arg3: memref<1x128xf32, #tpu.memory_space<vmem>>, %arg4: memref<128x256xbf16, #tpu.memory_space<vmem>>, %arg5: memref<1x256xf32, #tpu.memory_space<vmem>>, %arg6: memref<256x128xbf16, #tpu.memory_space<vmem>>, %arg7: memref<1x128xf32, #tpu.memory_space<vmem>>, %arg8: memref<16x128xbf16, #tpu.memory_space<vmem>>, %arg9: memref<16x1xf32, #tpu.memory_space<vmem>>) attributes {dimension_semantics = [#tpu.dimension_semantics<parallel>], iteration_bounds = array<i64: 2>, scalar_prefetch = 0 : i64, scratch_operands = 0 : i64, tpu.core_type = #tpu.core_type<tc>, window_params = [{transform_indices = @transform_0, window_bounds = array<i64: 16, 24>}, {pipeline_mode = #tpu.pipeline_mode<synchronous>, transform_indices = @transform_1, window_bounds = array<i64: 24, 128>}, {pipeline_mode = #tpu.pipeline_mode<synchronous>, transform_indices = @transform_2, window_bounds = array<i64: 1, 128>}, {pipeline_mode = #tpu.pipeline_mode<synchronous>, transform_indices = @transform_3, window_bounds = array<i64: 128, 256>}, {pipeline_mode = #tpu.pipeline_mode<synchronous>, transform_indices = @transform_4, window_bounds = array<i64: 1, 256>}, {pipeline_mode = #tpu.pipeline_mode<synchronous>, transform_indices = @transform_5, window_bounds = array<i64: 256, 128>}, {pipeline_mode = #tpu.pipeline_mode<synchronous>, transform_indices = @transform_6, window_bounds = array<i64: 1, 128>}, {transform_indices = @transform_7, window_bounds = array<i64: 16, 128>}, {transform_indices = @transform_8, window_bounds = array<i64: 16, 1>}]} {
    %c0 = arith.constant 0 : index
    %c0_0 = arith.constant 0 : index
    %0 = vector.load %arg1[%c0, %c0_0] : memref<16x24xf32, #tpu.memory_space<vmem>>, vector<16x24xf32>
    %1 = arith.truncf %0 : vector<16x24xf32> to vector<16x24xbf16>
    %c0_1 = arith.constant 0 : index
    %c0_2 = arith.constant 0 : index
    %2 = vector.load %arg2[%c0_1, %c0_2] : memref<24x128xbf16, #tpu.memory_space<vmem>>, vector<24x128xbf16>
    %cst = arith.constant dense<0.000000e+00> : vector<16x128xf32>
    %3 = tpu.matmul %1, %2, %cst {dimension_numbers = #tpu.dot_dimension_numbers<[1], [0], [0], [1], [0, 0, 1, 1], [], []>} : vector<16x24xbf16>, vector<24x128xbf16>, vector<16x128xf32> -> vector<16x128xf32>
    %c0_3 = arith.constant 0 : index
    %c0_4 = arith.constant 0 : index
    %4 = vector.load %arg3[%c0_3, %c0_4] : memref<1x128xf32, #tpu.memory_space<vmem>>, vector<1x128xf32>
    %5 = vector.broadcast %4 : vector<1x128xf32> to vector<16x128xf32>
    %6 = arith.addf %3, %5 : vector<16x128xf32>
    %cst_5 = arith.constant 0.000000e+00 : f32
    %7 = vector.broadcast %cst_5 : f32 to vector<16x128xf32>
    %8 = arith.maximumf %6, %7 : vector<16x128xf32>
    %9 = arith.truncf %8 : vector<16x128xf32> to vector<16x128xbf16>
    %c0_6 = arith.constant 0 : index
    %c0_7 = arith.constant 0 : index
    %10 = vector.load %arg4[%c0_6, %c0_7] : memref<128x256xbf16, #tpu.memory_space<vmem>>, vector<128x256xbf16>
    %cst_8 = arith.constant dense<0.000000e+00> : vector<16x256xf32>
    %11 = tpu.matmul %9, %10, %cst_8 {dimension_numbers = #tpu.dot_dimension_numbers<[1], [0], [0], [1], [0, 0, 1, 1], [], []>} : vector<16x128xbf16>, vector<128x256xbf16>, vector<16x256xf32> -> vector<16x256xf32>
    %c0_9 = arith.constant 0 : index
    %c0_10 = arith.constant 0 : index
    %12 = vector.load %arg5[%c0_9, %c0_10] : memref<1x256xf32, #tpu.memory_space<vmem>>, vector<1x256xf32>
    %13 = vector.broadcast %12 : vector<1x256xf32> to vector<16x256xf32>
    %14 = arith.addf %11, %13 : vector<16x256xf32>
    %cst_11 = arith.constant 0.000000e+00 : f32
    %15 = vector.broadcast %cst_11 : f32 to vector<16x256xf32>
    %16 = arith.maximumf %14, %15 : vector<16x256xf32>
    %17 = arith.truncf %16 : vector<16x256xf32> to vector<16x256xbf16>
    %c0_12 = arith.constant 0 : index
    %c0_13 = arith.constant 0 : index
    %18 = vector.load %arg6[%c0_12, %c0_13] : memref<256x128xbf16, #tpu.memory_space<vmem>>, vector<256x128xbf16>
    %cst_14 = arith.constant dense<0.000000e+00> : vector<16x128xf32>
    %19 = tpu.matmul %17, %18, %cst_14 {dimension_numbers = #tpu.dot_dimension_numbers<[1], [0], [0], [1], [0, 0, 1, 1], [], []>} : vector<16x256xbf16>, vector<256x128xbf16>, vector<16x128xf32> -> vector<16x128xf32>
    %c0_15 = arith.constant 0 : index
    %c0_16 = arith.constant 0 : index
    %20 = vector.load %arg7[%c0_15, %c0_16] : memref<1x128xf32, #tpu.memory_space<vmem>>, vector<1x128xf32>
    %21 = vector.broadcast %20 : vector<1x128xf32> to vector<16x128xf32>
    %22 = arith.addf %19, %21 : vector<16x128xf32>
    %23 = tpu.iota {dimensions = array<i32: 1>} : vector<16x128xi32>
    %c6_i32 = arith.constant 6 : i32
    %24 = vector.broadcast %c6_i32 : i32 to vector<16x128xi32>
    %25 = arith.cmpi slt, %23, %24 : vector<16x128xi32>
    %cst_17 = arith.constant -1.000000e+30 : f32
    %26 = vector.broadcast %cst_17 : f32 to vector<16x128xf32>
    %27 = arith.select %25, %22, %26 : vector<16x128xi1>, vector<16x128xf32>
    %cst_18 = arith.constant dense<0xFF800000> : vector<16xf32>
    %28 = vector.multi_reduction <maximumf>, %27, %cst_18 [1] : vector<16x128xf32> to vector<16xf32>
    %29 = vector.shape_cast %28 : vector<16xf32> to vector<16x1xf32>
    %30 = vector.broadcast %29 : vector<16x1xf32> to vector<16x128xf32>
    %31 = arith.subf %27, %30 : vector<16x128xf32>
    %32 = math.exp %31 : vector<16x128xf32>
    %cst_19 = arith.constant dense<0.000000e+00> : vector<16xf32>
    %33 = vector.multi_reduction <add>, %32, %cst_19 [1] : vector<16x128xf32> to vector<16xf32>
    %34 = vector.shape_cast %33 : vector<16xf32> to vector<16x1xf32>
    %35 = vector.broadcast %34 : vector<16x1xf32> to vector<16x128xf32>
    %36 = arith.divf %32, %35 : vector<16x128xf32>
    %37 = arith.truncf %36 : vector<16x128xf32> to vector<16x128xbf16>
    %c0_20 = arith.constant 0 : index
    %c0_21 = arith.constant 0 : index
    %38 = vector.load %arg8[%c0_20, %c0_21] : memref<16x128xbf16, #tpu.memory_space<vmem>>, vector<16x128xbf16>
    tpu.vector_store %arg8[%c0_20, %c0_21], %37 {strides = array<i32>} : memref<16x128xbf16, #tpu.memory_space<vmem>>, vector<16x128xbf16>,
    %39 = vector.extract_strided_slice %22 {offsets = [0, 6], sizes = [16, 1], strides = [1, 1]} : vector<16x128xf32> to vector<16x1xf32>
    %c0_22 = arith.constant 0 : index
    %c0_23 = arith.constant 0 : index
    %40 = vector.load %arg9[%c0_22, %c0_23] : memref<16x1xf32, #tpu.memory_space<vmem>>, vector<16x1xf32>
    tpu.vector_store %arg9[%c0_22, %c0_23], %39 {strides = array<i32>} : memref<16x1xf32, #tpu.memory_space<vmem>>, vector<16x1xf32>,
    return
  }
  func.func @transform_0(%arg0: i32) -> (i32, i32) {
    %c0_i32 = arith.constant 0 : i32
    %c0_i32_0 = arith.constant 0 : i32
    return %arg0, %c0_i32 : i32, i32
  }
  func.func @transform_1(%arg0: i32) -> (i32, i32) {
    %c0_i32 = arith.constant 0 : i32
    %c0_i32_0 = arith.constant 0 : i32
    %c0_i32_1 = arith.constant 0 : i32
    return %c0_i32, %c0_i32_0 : i32, i32
  }
  func.func @transform_2(%arg0: i32) -> (i32, i32) {
    %c0_i32 = arith.constant 0 : i32
    %c0_i32_0 = arith.constant 0 : i32
    %c0_i32_1 = arith.constant 0 : i32
    return %c0_i32, %c0_i32_0 : i32, i32
  }
  func.func @transform_3(%arg0: i32) -> (i32, i32) {
    %c0_i32 = arith.constant 0 : i32
    %c0_i32_0 = arith.constant 0 : i32
    %c0_i32_1 = arith.constant 0 : i32
    return %c0_i32, %c0_i32_0 : i32, i32
  }
  func.func @transform_4(%arg0: i32) -> (i32, i32) {
    %c0_i32 = arith.constant 0 : i32
    %c0_i32_0 = arith.constant 0 : i32
    %c0_i32_1 = arith.constant 0 : i32
    return %c0_i32, %c0_i32_0 : i32, i32
  }
  func.func @transform_5(%arg0: i32) -> (i32, i32) {
    %c0_i32 = arith.constant 0 : i32
    %c0_i32_0 = arith.constant 0 : i32
    %c0_i32_1 = arith.constant 0 : i32
    return %c0_i32, %c0_i32_0 : i32, i32
  }
  func.func @transform_6(%arg0: i32) -> (i32, i32) {
    %c0_i32 = arith.constant 0 : i32
    %c0_i32_0 = arith.constant 0 : i32
    %c0_i32_1 = arith.constant 0 : i32
    return %c0_i32, %c0_i32_0 : i32, i32
  }
  func.func @transform_7(%arg0: i32) -> (i32, i32) {
    %c0_i32 = arith.constant 0 : i32
    %c0_i32_0 = arith.constant 0 : i32
    return %arg0, %c0_i32 : i32, i32
  }
  func.func @transform_8(%arg0: i32) -> (i32, i32) {
    %c0_i32 = arith.constant 0 : i32
    %c0_i32_0 = arith.constant 0 : i32
    return %arg0, %c0_i32 : i32, i32
  }
}

</mosaic_0001>

<llo_original>
// kernel: tpu_custom_call.1
$region0: #{tpu_custom_call.1}
  #allocation0 [shape = 'u32[]', space=smem, size = 0x4, offset = 0x4, fixed_abs, tag = 'smem constant byte address 0x4 - core index']
  #allocation1 [shape = 'u32[144,128]{1,0:T(1,128)}', space=vmem, size = 0x12000, scoped, tag = 'internal scratch']
  %s0 = inlined_call_operand.vmem [shape: f32[32,24], index: 0, kind: input, shape index: {}]
  %s1 = inlined_call_operand.vmem [shape: bf16[24,128], index: 1, kind: input, shape index: {}]
  %s2 = inlined_call_operand.vmem [shape: f32[1,128], index: 2, kind: input, shape index: {}]
  %s3 = inlined_call_operand.hbm [shape: bf16[128,256], index: 3, kind: input, shape index: {}]
  %s4 = inlined_call_operand.vmem [shape: f32[1,256], index: 4, kind: input, shape index: {}]
  %s5 = inlined_call_operand.hbm [shape: bf16[256,128], index: 5, kind: input, shape index: {}]
  %s6 = inlined_call_operand.vmem [shape: f32[1,128], index: 6, kind: input, shape index: {}]
  %s7 = inlined_call_operand.hbm [shape: bf16[32,128], index: 7, kind: output, shape index: {0}]
  %s8 = inlined_call_operand.vmem [shape: f32[32,1], index: 8, kind: output, shape index: {1}]
  %9 = xla_tuple %s7, %s8
  %s10 = sld [smem:[#allocation0]]
  $region77: #{tpu_custom_call.1} parent=0
    _
  %s12 = ssub.s32 1, %s10
  %s13 = scalar_select 0, %s12, %s10
  $region1: #{tpu_custom_call.1} parent=0
    #allocation2 [shape = 'u8[65536]{0}', space=vmem, size = 0x10000, scoped, tag = 'input window, operand 3, single buffered']
    #allocation3 [shape = 's32[2]{0}', space=sflag, size = 0x8, scoped, tag = 'scoped memory for tpu_custom_call.1']
    #allocation4 [shape = 's32[2]{0}', space=sflag, size = 0x8, scoped, tag = 'scoped memory for tpu_custom_call.1']
    #allocation5 [shape = 'u8[65536]{0}', space=vmem, size = 0x10000, scoped, tag = 'input window, operand 5, single buffered']
    #allocation6 [shape = 's32[1]{0}', space=sflag, size = 0x4, scoped, tag = 'scoped memory for tpu_custom_call.1']
    #allocation7 [shape = 'u8[8192]{0}', space=vmem, size = 0x2000, scoped, tag = 'output window, operand 0']
    %14 = vsyncpa [#allocation3], 0
    %15 = vsyncpa [#allocation6], 0
    %16 = vsyncpa [#allocation4], 0
    %s17 = scalar_lea.sflag [#allocation4], 1
    %18 = vsyncpa %s17, 0
    loop: start=0, step=1, limit=4
    $region2: #{tpu_custom_call.1} parent=1 // loop_pre_header
      _
    $region3: #{tpu_custom_call.1} parent=1 // loop_header
      %s20 = sphi 0, %s24
      %p21 = scmp.ge.s32.totalorder %s20, 4
      %s30 = sphi 0, %s32
      %s33 = sphi 0, %s30
      %s34 = sphi 0, %s33
      %s50 = sphi 0, %s34
      %s54 = sphi 0, %s54
      %s56 = sphi 0, %s54
      %s57 = sphi 0, %s56
      %s71 = sphi 0, %s57
      %s75 = sphi 0, %s75
      %s77 = sphi 0, %s75
      %s78 = sphi 0, %s77
      %s92 = sphi 0, %s78
      %s96 = sphi 0, %s96
      %s98 = sphi 0, %s96
      %s99 = sphi 0, %s98
      %s113 = sphi 0, %s99
      %s117 = sphi 0, %s117
      %s119 = sphi 0, %s117
      %s120 = sphi 0, %s119
      %s134 = sphi 0, %s120
      %s138 = sphi 0, %s138
      %s140 = sphi 0, %s138
      %s141 = sphi 0, %s140
      %s155 = sphi 0, %s141
      %s159 = sphi 0, %s159
      %s161 = sphi 0, %s159
      %s162 = sphi 0, %s161
      %s176 = sphi 0, %s162
      %s182 = sphi 0, %s184
      %s185 = sphi 0, %s182
      %s186 = sphi 0, %s185
      %s202 = sphi 0, %s186
      %s208 = sphi 0, %s210
      %s211 = sphi 0, %s208
      %s212 = sphi 0, %s211
      %s228 = sphi 0, %s212
    $region4: #{tpu_custom_call.1} parent=1 // loop_header_branch
      %23 = sbr.rel (%p21) target = $region8
    $region5: #{tpu_custom_call.1} parent=1 // loop_body
      %s25 = ssub.s32 %s20, 1
      %s26 = ssub.s32 %s20, 2
      %s27 = sadd.s32 %s20, 1
      %s28 = ssub.s32 %s20, %s27
      %p29 = scmp.eq.s32.totalorder %s28, 0
      %s31 = sadd.s32 %s30, 1
      %s32 = scalar_select %p29, %s30, %s31
      %p35 = pneg %p29
      %p36 = scmp.eq.s32.totalorder %s20, 1
      %p37 = por %p35, %p36
      %p38 = scmp.ne.s32.totalorder %s30, %s33
      %p39 = scmp.eq.s32.totalorder %s20, 0
      %p40 = por %p38, %p39
      %p41 = scmp.ne.s32.totalorder %s30, %s33
      %p42 = scmp.eq.s32.totalorder %s25, 1
      %p43 = por %p41, %p42
      %p44 = scmp.ne.s32.totalorder %s33, %s34
      %p45 = scmp.eq.s32.totalorder %s25, 0
      %p46 = por %p44, %p45
      %p47 = scmp.ne.s32.totalorder %s33, %s34
      %p48 = scmp.eq.s32.totalorder %s26, 1
      %p49 = por %p47, %p48
      %p51 = scmp.ne.s32.totalorder %s34, %s50
      %p52 = scmp.eq.s32.totalorder %s26, 0
      %p53 = por %p51, %p52
      %s55 = sadd.s32 %s54, 1
      %p58 = scmp.eq.s32.totalorder %s20, 1
      %p59 = scmp.ne.s32.totalorder %s54, %s56
      %p60 = scmp.eq.s32.totalorder %s20, 0
      %p61 = por %p59, %p60
      %p62 = scmp.ne.s32.totalorder %s54, %s56
      %p63 = scmp.eq.s32.totalorder %s25, 1
      %p64 = por %p62, %p63
      %p65 = scmp.ne.s32.totalorder %s56, %s57
      %p66 = scmp.eq.s32.totalorder %s25, 0
      %p67 = por %p65, %p66
      %p68 = scmp.ne.s32.totalorder %s56, %s57
      %p69 = scmp.eq.s32.totalorder %s26, 1
      %p70 = por %p68, %p69
      %p72 = scmp.ne.s32.totalorder %s57, %s71
      %p73 = scmp.eq.s32.totalorder %s26, 0
      %p74 = por %p72, %p73
      %s76 = sadd.s32 %s75, 1
      %p79 = scmp.eq.s32.totalorder %s20, 1
      %p80 = scmp.ne.s32.totalorder %s75, %s77
      %p81 = scmp.eq.s32.totalorder %s20, 0
      %p82 = por %p80, %p81
      %p83 = scmp.ne.s32.totalorder %s75, %s77
      %p84 = scmp.eq.s32.totalorder %s25, 1
      %p85 = por %p83, %p84
      %p86 = scmp.ne.s32.totalorder %s77, %s78
      %p87 = scmp.eq.s32.totalorder %s25, 0
      %p88 = por %p86, %p87
      %p89 = scmp.ne.s32.totalorder %s77, %s78
      %p90 = scmp.eq.s32.totalorder %s26, 1
      %p91 = por %p89, %p90
      %p93 = scmp.ne.s32.totalorder %s78, %s92
      %p94 = scmp.eq.s32.totalorder %s26, 0
      %p95 = por %p93, %p94
      %s97 = sadd.s32 %s96, 1
      %p100 = scmp.eq.s32.totalorder %s20, 1
      %p101 = scmp.ne.s32.totalorder %s96, %s98
      %p102 = scmp.eq.s32.totalorder %s20, 0
      %p103 = por %p101, %p102
      %p104 = scmp.ne.s32.totalorder %s96, %s98
      %p105 = scmp.eq.s32.totalorder %s25, 1
      %p106 = por %p104, %p105
      %p107 = scmp.ne.s32.totalorder %s98, %s99
      %p108 = scmp.eq.s32.totalorder %s25, 0
      %p109 = por %p107, %p108
      %p110 = scmp.ne.s32.totalorder %s98, %s99
      %p111 = scmp.eq.s32.totalorder %s26, 1
      %p112 = por %p110, %p111
      %p114 = scmp.ne.s32.totalorder %s99, %s113
      %p115 = scmp.eq.s32.totalorder %s26, 0
      %p116 = por %p114, %p115
      %s118 = sadd.s32 %s117, 1
      %p121 = scmp.eq.s32.totalorder %s20, 1
      %p122 = scmp.ne.s32.totalorder %s117, %s119
      %p123 = scmp.eq.s32.totalorder %s20, 0
      %p124 = por %p122, %p123
      %p125 = scmp.ne.s32.totalorder %s117, %s119
      %p126 = scmp.eq.s32.totalorder %s25, 1
      %p127 = por %p125, %p126
      %p128 = scmp.ne.s32.totalorder %s119, %s120
      %p129 = scmp.eq.s32.totalorder %s25, 0
      %p130 = por %p128, %p129
      %p131 = scmp.ne.s32.totalorder %s119, %s120
      %p132 = scmp.eq.s32.totalorder %s26, 1
      %p133 = por %p131, %p132
      %p135 = scmp.ne.s32.totalorder %s120, %s134
      %p136 = scmp.eq.s32.totalorder %s26, 0
      %p137 = por %p135, %p136
      %s139 = sadd.s32 %s138, 1
      %p142 = scmp.eq.s32.totalorder %s20, 1
      %p143 = scmp.ne.s32.totalorder %s138, %s140
      %p144 = scmp.eq.s32.totalorder %s20, 0
      %p145 = por %p143, %p144
      %p146 = scmp.ne.s32.totalorder %s138, %s140
      %p147 = scmp.eq.s32.totalorder %s25, 1
      %p148 = por %p146, %p147
      %p149 = scmp.ne.s32.totalorder %s140, %s141
      %p150 = scmp.eq.s32.totalorder %s25, 0
      %p151 = por %p149, %p150
      %p152 = scmp.ne.s32.totalorder %s140, %s141
      %p153 = scmp.eq.s32.totalorder %s26, 1
      %p154 = por %p152, %p153
      %p156 = scmp.ne.s32.totalorder %s141, %s155
      %p157 = scmp.eq.s32.totalorder %s26, 0
      %p158 = por %p156, %p157
      %s160 = sadd.s32 %s159, 1
      %p163 = scmp.eq.s32.totalorder %s20, 1
      %p164 = scmp.ne.s32.totalorder %s159, %s161
      %p165 = scmp.eq.s32.totalorder %s20, 0
      %p166 = por %p164, %p165
      %p167 = scmp.ne.s32.totalorder %s159, %s161
      %p168 = scmp.eq.s32.totalorder %s25, 1
      %p169 = por %p167, %p168
      %p170 = scmp.ne.s32.totalorder %s161, %s162
      %p171 = scmp.eq.s32.totalorder %s25, 0
      %p172 = por %p170, %p171
      %p173 = scmp.ne.s32.totalorder %s161, %s162
      %p174 = scmp.eq.s32.totalorder %s26, 1
      %p175 = por %p173, %p174
      %p177 = scmp.ne.s32.totalorder %s162, %s176
      %p178 = scmp.eq.s32.totalorder %s26, 0
      %p179 = por %p177, %p178
      %s180 = ssub.s32 %s20, %s27
      %p181 = scmp.eq.s32.totalorder %s180, 0
      %s183 = sadd.s32 %s182, 1
      %s184 = scalar_select %p181, %s182, %s183
      %p187 = pneg %p181
      %p188 = scmp.eq.s32.totalorder %s20, 1
      %p189 = por %p187, %p188
      %p190 = scmp.ne.s32.totalorder %s182, %s185
      %p191 = scmp.eq.s32.totalorder %s20, 0
      %p192 = por %p190, %p191
      %p193 = scmp.ne.s32.totalorder %s182, %s185
      %p194 = scmp.eq.s32.totalorder %s25, 1
      %p195 = por %p193, %p194
      %p196 = scmp.ne.s32.totalorder %s185, %s186
      %p197 = scmp.eq.s32.totalorder %s25, 0
      %p198 = por %p196, %p197
      %p199 = scmp.ne.s32.totalorder %s185, %s186
      %p200 = scmp.eq.s32.totalorder %s26, 1
      %p201 = por %p199, %p200
      %p203 = scmp.ne.s32.totalorder %s186, %s202
      %p204 = scmp.eq.s32.totalorder %s26, 0
      %p205 = por %p203, %p204
      %s206 = ssub.s32 %s20, %s27
      %p207 = scmp.eq.s32.totalorder %s206, 0
      %s209 = sadd.s32 %s208, 1
      %s210 = scalar_select %p207, %s208, %s209
      %p213 = pneg %p207
      %p214 = scmp.eq.s32.totalorder %s20, 1
      %p215 = por %p213, %p214
      %p216 = scmp.ne.s32.totalorder %s208, %s211
      %p217 = scmp.eq.s32.totalorder %s20, 0
      %p218 = por %p216, %p217
      %p219 = scmp.ne.s32.totalorder %s208, %s211
      %p220 = scmp.eq.s32.totalorder %s25, 1
      %p221 = por %p219, %p220
      %p222 = scmp.ne.s32.totalorder %s211, %s212
      %p223 = scmp.eq.s32.totalorder %s25, 0
      %p224 = por %p222, %p223
      %p225 = scmp.ne.s32.totalorder %s211, %s212
      %p226 = scmp.eq.s32.totalorder %s26, 1
      %p227 = por %p225, %p226
      %p229 = scmp.ne.s32.totalorder %s212, %s228
      %p230 = scmp.eq.s32.totalorder %s26, 0
      %p231 = por %p229, %p230
      %p232 = scmp.le.s32.totalorder 1, %s20
      %p233 = scmp.lt.s32.totalorder %s20, 3
      %p234 = pnand %p232, %p233
      %p235 = pneg %p234
      // Predicated region
      $region9: #{tpu_custom_call.1} parent=5 // pred_check
        _
      $region10: #{tpu_custom_call.1} parent=5 // pred_check_branch
        %237 = sbr.rel (%p234) target = $region12
      $region11: #{tpu_custom_call.1} parent=5 // pred_region
        %s238 = ssub.s32 %s20, 1
        // Predicated region
        $region13: #{tpu_custom_call.1} parent=11 // pred_check
          %p239 = pneg %p67
        $region14: #{tpu_custom_call.1} parent=11 // pred_check_branch
          %241 = sbr.rel (%p239) target = $region16
        $region15: #{tpu_custom_call.1} parent=11 // pred_region
          _
        $region16: #{tpu_custom_call.1} parent=11 // pred_fallthru
          _
        // Predicated region
        $region17: #{tpu_custom_call.1} parent=11 // pred_check
          %p242 = pneg %p88
        $region18: #{tpu_custom_call.1} parent=11 // pred_check_branch
          %244 = sbr.rel (%p242) target = $region20
        $region19: #{tpu_custom_call.1} parent=11 // pred_region
          _
        $region20: #{tpu_custom_call.1} parent=11 // pred_fallthru
          _
        // Predicated region
        $region21: #{tpu_custom_call.1} parent=11 // pred_check
          %p245 = pneg %p109
        $region22: #{tpu_custom_call.1} parent=11 // pred_check_branch
          %247 = sbr.rel (%p245) target = $region24
        $region23: #{tpu_custom_call.1} parent=11 // pred_region
          %s249 = ssub.s32 2048, 2048
          %250 = vsyncadd [#allocation3], %s249
          %s251 = sshll.u32 [#allocation2], 4
          %s252 = int_to_ptr.vmem [resolvable:$true] %s251
          %257 = dma.hbm_to_vmem [thread:$0]  %s3, 2048, %s252, [#allocation3], 128, 128, 8
        $region24: #{tpu_custom_call.1} parent=11 // pred_fallthru
          _
        // Predicated region
        $region25: #{tpu_custom_call.1} parent=11 // pred_check
          %p258 = pneg %p130
        $region26: #{tpu_custom_call.1} parent=11 // pred_check_branch
          %260 = sbr.rel (%p258) target = $region28
        $region27: #{tpu_custom_call.1} parent=11 // pred_region
          _
        $region28: #{tpu_custom_call.1} parent=11 // pred_fallthru
          _
        // Predicated region
        $region29: #{tpu_custom_call.1} parent=11 // pred_check
          %p261 = pneg %p151
        $region30: #{tpu_custom_call.1} parent=11 // pred_check_branch
          %263 = sbr.rel (%p261) target = $region32
        $region31: #{tpu_custom_call.1} parent=11 // pred_region
          %s265 = ssub.s32 2048, 2048
          %266 = vsyncadd [#allocation6], %s265
          %s267 = sshll.u32 [#allocation5], 4
          %s268 = int_to_ptr.vmem [resolvable:$true] %s267
          %273 = dma.hbm_to_vmem [thread:$0]  %s5, 2048, %s268, [#allocation6], 64, 64, 4
        $region32: #{tpu_custom_call.1} parent=11 // pred_fallthru
          _
        // Predicated region
        $region33: #{tpu_custom_call.1} parent=11 // pred_check
          %p274 = pneg %p172
        $region34: #{tpu_custom_call.1} parent=11 // pred_check_branch
          %276 = sbr.rel (%p274) target = $region36
        $region35: #{tpu_custom_call.1} parent=11 // pred_region
          _
        $region36: #{tpu_custom_call.1} parent=11 // pred_fallthru
          _
      $region12: #{tpu_custom_call.1} parent=5 // pred_fallthru
        _
      %p277 = scmp.lt.s32.totalorder %s20, 2
      // Predicated region
      $region37: #{tpu_custom_call.1} parent=5 // pred_check
        %p278 = pneg %p277
      $region38: #{tpu_custom_call.1} parent=5 // pred_check_branch
        %280 = sbr.rel (%p278) target = $region40
      $region39: #{tpu_custom_call.1} parent=5 // pred_region
        // Predicated region
        $region41: #{tpu_custom_call.1} parent=39 // pred_check
          %p281 = pneg %p40
        $region42: #{tpu_custom_call.1} parent=39 // pred_check_branch
          %283 = sbr.rel (%p281) target = $region44
        $region43: #{tpu_custom_call.1} parent=39 // pred_region
          %s284 = smul.u32 2, %s20
          %p285 = scmp.lt.s32.totalorder %s284, 3
          %s286 = scalar_select %p285, %s284, 3
          %s287 = smul.addr %s286, 8
          %s288 = scalar_lea.vmem %s0, %s287
          %s289 = smul.u32 2, %s20
        $region44: #{tpu_custom_call.1} parent=39 // pred_fallthru
          _
      $region40: #{tpu_custom_call.1} parent=5 // pred_fallthru
        _
      %p290 = scmp.le.s32.totalorder 1, %s20
      %p291 = scmp.lt.s32.totalorder %s20, 3
      %p292 = pnand %p290, %p291
      %p293 = pneg %p292
      // Predicated region
      $region45: #{tpu_custom_call.1} parent=5 // pred_check
        _
      $region46: #{tpu_custom_call.1} parent=5 // pred_check_branch
        %295 = sbr.rel (%p292) target = $region48
      $region47: #{tpu_custom_call.1} parent=5 // pred_region
        %s296 = ssub.s32 %s20, 1
        // Predicated region
        $region49: #{tpu_custom_call.1} parent=47 // pred_check
          %p297 = pneg %p109
        $region50: #{tpu_custom_call.1} parent=47 // pred_check_branch
          %299 = sbr.rel (%p297) target = $region52
        $region51: #{tpu_custom_call.1} parent=47 // pred_region
          %300 = dma.done [#allocation3], 2048
        $region52: #{tpu_custom_call.1} parent=47 // pred_fallthru
          _
        // Predicated region
        $region53: #{tpu_custom_call.1} parent=47 // pred_check
          %p301 = pneg %p151
        $region54: #{tpu_custom_call.1} parent=47 // pred_check_branch
          %303 = sbr.rel (%p301) target = $region56
        $region55: #{tpu_custom_call.1} parent=47 // pred_region
          %304 = dma.done [#allocation6], 2048
        $region56: #{tpu_custom_call.1} parent=47 // pred_fallthru
          _
        %s305 = smul.u32 2, %s25
        %p306 = scmp.lt.s32.totalorder %s305, 3
        %s307 = scalar_select %p306, %s305, 3
        %s308 = smul.addr %s307, 8
        %s309 = scalar_lea.vmem %s0, %s308
        %p310 = pneg %p46
        %p311 = pneg %p43
        %p312 = pneg %p67
        %p313 = pneg %p64
        %p314 = pneg %p88
        %p315 = pneg %p85
        %p316 = pneg %p109
        %p317 = pneg %p106
        %p318 = pneg %p130
        %p319 = pneg %p127
        %p320 = pneg %p151
        %p321 = pneg %p148
        %p322 = pneg %p172
        %p323 = pneg %p169
        %p324 = pneg %p198
        %p325 = pneg %p195
        %s326 = sand.u32 %s185, 1
        %s327 = scalar_lea.sflag [#allocation4], %s326
        %s328 = sand.u32 %s185, 1
        %s329 = smul.addr %s328, 8
        %s330 = scalar_lea.vmem [#allocation7], %s329
        %p331 = pneg %p224
        %p332 = pneg %p221
        %s333 = smul.u32 2, %s25
        %p334 = scmp.lt.s32.totalorder %s333, 3
        %s335 = scalar_select %p334, %s333, 3
        %s336 = smul.addr %s335, 8
        %s337 = scalar_lea.vmem %s8, %s336
        %s338 = smul.u32 2, %s25
        %p339 = scmp.lt.s32.totalorder %s338, 3
        %s340 = scalar_select %p339, %s338, 3
        %s341 = smul.addr %s340, 8
        %s342 = scalar_lea.vmem %s0, %s341
        %s343 = smul.u32 2, %s25
        %s344 = smul.u32 2, %s25
        %s345 = smul.u32 2, %s25
        %p346 = scmp.lt.s32.totalorder %s345, 3
        %s347 = scalar_select %p346, %s345, 3
        %s348 = smul.addr %s347, 8
        %s349 = scalar_lea.vmem %s8, %s348
        %s350 = smul.u32 2, %s25
        %v352 = vld [vmem:[%s342] sm:$0xff]
        %v353 = vld [vmem:[%s342 + $0x8] sm:$0xff]
        %v354 = vpack.c.bf16 %v353, %v352
        %v355 = vld [vmem:[%s1] sm:$0xf]
        %v356 = vld [vmem:[%s1 + $0x4] sm:$0xf]
        %v357 = vld [vmem:[%s1 + $0x8] sm:$0xf]
        %v358 = vld [vmem:[%s2] sm:$0x1]
        %v360 = vlaneseq
        %v361 = vshrl.u32 %v360, 7
        %v362 = vsub.s32 0, %v361
        %v363 = vrot.slane %v358, %v362
        %v368 = vunpack.c.l.b16 %v355
        %v369 = vunpack.c.l.b16 %v356
        %v370 = vunpack.c.l.b16 %v357
        %v371 = vpack.c.b16 %v369, %v368
        %v372 = vpack.c.b16 %v370, %v370
        %vm374 = vcmask 195584
        %v376 = vsel %vm374, %v354, 0
        %vm378 = vcmask 1043456
        %v380 = vsel %vm378, %v372, 0
        %382 = vmatprep.subr.bf16.mxu0 0
        %383 = vmatpush1.bf16.msra.mxu0 %v371
        %384 = vmatprep.subr.bf16.mxu0 0
        %385 = vmatpush1.bf16.msra.mxu0 %v380
        %386 = vmatprep.subr.bf16.mxu0 0
        %387 = vmatpush1.bf16.msra.mxu0 0
        %388 = vmatprep.subr.bf16.mxu0 0
        %389 = vmatpush1.bf16.msra.mxu0 0
        %390 = vmatprep.subr.bf16.mxu0 0
        %391 = vmatpush1.bf16.msra.mxu0 0
        %392 = vmatprep.subr.bf16.mxu0 0
        %393 = vmatpush1.bf16.msra.mxu0 0
        %394 = vmatprep.subr.bf16.mxu0 0
        %395 = vmatpush1.bf16.msra.mxu0 0
        %396 = vmatprep.subr.bf16.mxu0 0
        %397 = vmatpush1.bf16.msra.mxu0 0
        %398 = vmatprep.subr.bf16.mxu0 0
        %399 = vmatpush1.bf16.msra.mxu0 0
        %400 = vmatprep.subr.bf16.mxu0 0
        %401 = vmatpush1.bf16.msra.mxu0 0
        %402 = vmatprep.subr.bf16.mxu0 0
        %403 = vmatpush1.bf16.msra.mxu0 0
        %404 = vmatprep.subr.bf16.mxu0 0
        %405 = vmatpush1.bf16.msra.mxu0 0
        %406 = vmatprep.subr.bf16.mxu0 0
        %407 = vmatpush1.bf16.msra.mxu0 0
        %408 = vmatprep.subr.bf16.mxu0 0
        %409 = vmatpush1.bf16.msra.mxu0 0
        %410 = vmatprep.subr.bf16.mxu0 0
        %411 = vmatpush1.bf16.msra.mxu0 0
        %412 = vmatprep.subr.bf16.mxu0 0
        %413 = vmatpush1.bf16.msra.mxu0 0
        %414 = vmatprep.mubr.bf16.mxu0 0
        %415 = vmatmul.mubr.bf16.gmra.mrb[0].mxu0 %v376
        %v416 = vpop.f32.mrb[0].mxu0
        %v417 = vadd.f32 %v363, %v416
        %v418 = vpop.f32.mrb[0].mxu0
        %v419 = vpop.f32.mrb[0].mxu0
        %v420 = vadd.f32 %v363, %v419
        %v421 = vpop.f32.mrb[0].mxu0
        %422 = vdwg.mxu0
        %v423 = vmax.f32 %v417, 0.0
        %v424 = vmax.f32 %v420, 0.0
        %v425 = vpack.c.bf16 %v424, %v423
        %v426 = vld [vmem:[#allocation2] sm:$0xff]
        %v427 = vld [vmem:[#allocation2 + $0x8] sm:$0xff]
        %v428 = vld [vmem:[#allocation2 + $0x10] sm:$0xff]
        %v429 = vld [vmem:[#allocation2 + $0x18] sm:$0xff]
        %v430 = vld [vmem:[#allocation2 + $0x20] sm:$0xff]
        %v431 = vld [vmem:[#allocation2 + $0x28] sm:$0xff]
        %v432 = vld [vmem:[#allocation2 + $0x30] sm:$0xff]
        %v433 = vld [vmem:[#allocation2 + $0x38] sm:$0xff]
        %v434 = vld [vmem:[#allocation2 + $0x40] sm:$0xff]
        %v435 = vld [vmem:[#allocation2 + $0x48] sm:$0xff]
        %v436 = vld [vmem:[#allocation2 + $0x50] sm:$0xff]
        %v437 = vld [vmem:[#allocation2 + $0x58] sm:$0xff]
        %v438 = vld [vmem:[#allocation2 + $0x60] sm:$0xff]
        %v439 = vld [vmem:[#allocation2 + $0x68] sm:$0xff]
        %v440 = vld [vmem:[#allocation2 + $0x70] sm:$0xff]
        %v441 = vld [vmem:[#allocation2 + $0x78] sm:$0xff]
        %v442 = vld [vmem:[%s4] sm:$0x3]
        %v444 = vlaneseq
        %v445 = vshrl.u32 %v444, 7
        %v446 = vsub.s32 0, %v445
        %v447 = vrot.slane %v442, %v446
        %v448 = vlaneseq
        %v449 = vshrl.u32 %v448, 7
        %v450 = vsub.s32 1, %v449
        %v451 = vrot.slane %v442, %v450
        %v470 = vunpack.c.l.b16 %v426
        %v471 = vunpack.c.h.b16 %v426
        %v472 = vunpack.c.l.b16 %v427
        %v473 = vunpack.c.h.b16 %v427
        %v474 = vunpack.c.l.b16 %v428
        %v475 = vunpack.c.h.b16 %v428
        %v476 = vunpack.c.l.b16 %v429
        %v477 = vunpack.c.h.b16 %v429
        %v478 = vunpack.c.l.b16 %v430
        %v479 = vunpack.c.h.b16 %v430
        %v480 = vunpack.c.l.b16 %v431
        %v481 = vunpack.c.h.b16 %v431
        %v482 = vunpack.c.l.b16 %v432
        %v483 = vunpack.c.h.b16 %v432
        %v484 = vunpack.c.l.b16 %v433
        %v485 = vunpack.c.h.b16 %v433
        %v486 = vunpack.c.l.b16 %v434
        %v487 = vunpack.c.h.b16 %v434
        %v488 = vunpack.c.l.b16 %v435
        %v489 = vunpack.c.h.b16 %v435
        %v490 = vunpack.c.l.b16 %v436
        %v491 = vunpack.c.h.b16 %v436
        %v492 = vunpack.c.l.b16 %v437
        %v493 = vunpack.c.h.b16 %v437
        %v494 = vunpack.c.l.b16 %v438
        %v495 = vunpack.c.h.b16 %v438
        %v496 = vunpack.c.l.b16 %v439
        %v497 = vunpack.c.h.b16 %v439
        %v498 = vunpack.c.l.b16 %v440
        %v499 = vunpack.c.h.b16 %v440
        %v500 = vunpack.c.l.b16 %v441
        %v501 = vunpack.c.h.b16 %v441
        %v502 = vpack.c.b16 %v472, %v470
        %v503 = vpack.c.b16 %v473, %v471
        %v504 = vpack.c.b16 %v476, %v474
        %v505 = vpack.c.b16 %v477, %v475
        %v506 = vpack.c.b16 %v480, %v478
        %v507 = vpack.c.b16 %v481, %v479
        %v508 = vpack.c.b16 %v484, %v482
        %v509 = vpack.c.b16 %v485, %v483
        %v510 = vpack.c.b16 %v488, %v486
        %v511 = vpack.c.b16 %v489, %v487
        %v512 = vpack.c.b16 %v492, %v490
        %v513 = vpack.c.b16 %v493, %v491
        %v514 = vpack.c.b16 %v496, %v494
        %v515 = vpack.c.b16 %v497, %v495
        %v516 = vpack.c.b16 %v500, %v498
        %v517 = vpack.c.b16 %v501, %v499
        %534 = vmatprep.subr.bf16.mxu0 %v503
        %535 = vmatpush1.bf16.msra.mxu0 %v502
        %536 = vmatprep.subr.bf16.mxu0 %v505
        %537 = vmatpush1.bf16.msra.mxu0 %v504
        %538 = vmatprep.subr.bf16.mxu0 %v507
        %539 = vmatpush1.bf16.msra.mxu0 %v506
        %540 = vmatprep.subr.bf16.mxu0 %v509
        %541 = vmatpush1.bf16.msra.mxu0 %v508
        %542 = vmatprep.subr.bf16.mxu0 %v511
        %543 = vmatpush1.bf16.msra.mxu0 %v510
        %544 = vmatprep.subr.bf16.mxu0 %v513
        %545 = vmatpush1.bf16.msra.mxu0 %v512
        %546 = vmatprep.subr.bf16.mxu0 %v515
        %547 = vmatpush1.bf16.msra.mxu0 %v514
        %548 = vmatprep.subr.bf16.mxu0 %v517
        %549 = vmatpush1.bf16.msra.mxu0 %v516
        %550 = vmatprep.subr.bf16.mxu0 0
        %551 = vmatpush1.bf16.msra.mxu0 0
        %552 = vmatprep.subr.bf16.mxu0 0
        %553 = vmatpush1.bf16.msra.mxu0 0
        %554 = vmatprep.subr.bf16.mxu0 0
        %555 = vmatpush1.bf16.msra.mxu0 0
        %556 = vmatprep.subr.bf16.mxu0 0
        %557 = vmatpush1.bf16.msra.mxu0 0
        %558 = vmatprep.subr.bf16.mxu0 0
        %559 = vmatpush1.bf16.msra.mxu0 0
        %560 = vmatprep.subr.bf16.mxu0 0
        %561 = vmatpush1.bf16.msra.mxu0 0
        %562 = vmatprep.subr.bf16.mxu0 0
        %563 = vmatpush1.bf16.msra.mxu0 0
        %564 = vmatprep.subr.bf16.mxu0 0
        %565 = vmatpush1.bf16.msra.mxu0 0
        %566 = vmatprep.mubr.bf16.mxu0 0
        %567 = vmatmul.mubr.bf16.gmra.mrb[0].mxu0 %v425
        %v568 = vpop.f32.mrb[0].mxu0
        %v569 = vadd.f32 %v447, %v568
        %v570 = vpop.f32.mrb[0].mxu0
        %v571 = vadd.f32 %v451, %v570
        %v572 = vpop.f32.mrb[0].mxu0
        %v573 = vadd.f32 %v447, %v572
        %v574 = vpop.f32.mrb[0].mxu0
        %v575 = vadd.f32 %v451, %v574
        %576 = vdwg.mxu0
        %v577 = vmax.f32 %v569, 0.0
        %v578 = vmax.f32 %v571, 0.0
        %v579 = vmax.f32 %v573, 0.0
        %v580 = vmax.f32 %v575, 0.0
        %v581 = vpack.c.bf16 %v579, %v577
        %v582 = vpack.c.bf16 %v580, %v578
        %v583 = vld [vmem:[#allocation5] sm:$0xf]
        %v584 = vld [vmem:[#allocation5 + $0x4] sm:$0xf]
        %v585 = vld [vmem:[#allocation5 + $0x8] sm:$0xf]
        %v586 = vld [vmem:[#allocation5 + $0xc] sm:$0xf]
        %v587 = vld [vmem:[#allocation5 + $0x10] sm:$0xf]
        %v588 = vld [vmem:[#allocation5 + $0x14] sm:$0xf]
        %v589 = vld [vmem:[#allocation5 + $0x18] sm:$0xf]
        %v590 = vld [vmem:[#allocation5 + $0x1c] sm:$0xf]
        %v591 = vld [vmem:[#allocation5 + $0x20] sm:$0xf]
        %v592 = vld [vmem:[#allocation5 + $0x24] sm:$0xf]
        %v593 = vld [vmem:[#allocation5 + $0x28] sm:$0xf]
        %v594 = vld [vmem:[#allocation5 + $0x2c] sm:$0xf]
        %v595 = vld [vmem:[#allocation5 + $0x30] sm:$0xf]
        %v596 = vld [vmem:[#allocation5 + $0x34] sm:$0xf]
        %v597 = vld [vmem:[#allocation5 + $0x38] sm:$0xf]
        %v598 = vld [vmem:[#allocation5 + $0x3c] sm:$0xf]
        %v599 = vld [vmem:[#allocation5 + $0x40] sm:$0xf]
        %v600 = vld [vmem:[#allocation5 + $0x44] sm:$0xf]
        %v601 = vld [vmem:[#allocation5 + $0x48] sm:$0xf]
        %v602 = vld [vmem:[#allocation5 + $0x4c] sm:$0xf]
        %v603 = vld [vmem:[#allocation5 + $0x50] sm:$0xf]
        %v604 = vld [vmem:[#allocation5 + $0x54] sm:$0xf]
        %v605 = vld [vmem:[#allocation5 + $0x58] sm:$0xf]
        %v606 = vld [vmem:[#allocation5 + $0x5c] sm:$0xf]
        %v607 = vld [vmem:[#allocation5 + $0x60] sm:$0xf]
        %v608 = vld [vmem:[#allocation5 + $0x64] sm:$0xf]
        %v609 = vld [vmem:[#allocation5 + $0x68] sm:$0xf]
        %v610 = vld [vmem:[#allocation5 + $0x6c] sm:$0xf]
        %v611 = vld [vmem:[#allocation5 + $0x70] sm:$0xf]
        %v612 = vld [vmem:[#allocation5 + $0x74] sm:$0xf]
        %v613 = vld [vmem:[#allocation5 + $0x78] sm:$0xf]
        %v614 = vld [vmem:[#allocation5 + $0x7c] sm:$0xf]
        %v615 = vld [vmem:[%s6] sm:$0x1]
        %v617 = vlaneseq
        %v618 = vshrl.u32 %v617, 7
        %v619 = vsub.s32 0, %v618
        %v620 = vrot.slane %v615, %v619
        %v654 = vunpack.c.l.b16 %v583
        %v655 = vunpack.c.l.b16 %v584
        %v656 = vunpack.c.l.b16 %v585
        %v657 = vunpack.c.l.b16 %v586
        %v658 = vunpack.c.l.b16 %v587
        %v659 = vunpack.c.l.b16 %v588
        %v660 = vunpack.c.l.b16 %v589
        %v661 = vunpack.c.l.b16 %v590
        %v662 = vunpack.c.l.b16 %v591
        %v663 = vunpack.c.l.b16 %v592
        %v664 = vunpack.c.l.b16 %v593
        %v665 = vunpack.c.l.b16 %v594
        %v666 = vunpack.c.l.b16 %v595
        %v667 = vunpack.c.l.b16 %v596
        %v668 = vunpack.c.l.b16 %v597
        %v669 = vunpack.c.l.b16 %v598
        %v670 = vunpack.c.l.b16 %v599
        %v671 = vunpack.c.l.b16 %v600
        %v672 = vunpack.c.l.b16 %v601
        %v673 = vunpack.c.l.b16 %v602
        %v674 = vunpack.c.l.b16 %v603
        %v675 = vunpack.c.l.b16 %v604
        %v676 = vunpack.c.l.b16 %v605
        %v677 = vunpack.c.l.b16 %v606
        %v678 = vunpack.c.l.b16 %v607
        %v679 = vunpack.c.l.b16 %v608
        %v680 = vunpack.c.l.b16 %v609
        %v681 = vunpack.c.l.b16 %v610
        %v682 = vunpack.c.l.b16 %v611
        %v683 = vunpack.c.l.b16 %v612
        %v684 = vunpack.c.l.b16 %v613
        %v685 = vunpack.c.l.b16 %v614
        %v686 = vpack.c.b16 %v655, %v654
        %v687 = vpack.c.b16 %v657, %v656
        %v688 = vpack.c.b16 %v659, %v658
        %v689 = vpack.c.b16 %v661, %v660
        %v690 = vpack.c.b16 %v663, %v662
        %v691 = vpack.c.b16 %v665, %v664
        %v692 = vpack.c.b16 %v667, %v666
        %v693 = vpack.c.b16 %v669, %v668
        %v694 = vpack.c.b16 %v671, %v670
        %v695 = vpack.c.b16 %v673, %v672
        %v696 = vpack.c.b16 %v675, %v674
        %v697 = vpack.c.b16 %v677, %v676
        %v698 = vpack.c.b16 %v679, %v678
        %v699 = vpack.c.b16 %v681, %v680
        %v700 = vpack.c.b16 %v683, %v682
        %v701 = vpack.c.b16 %v685, %v684
        %718 = vmatprep.subr.bf16.mxu0 0
        %719 = vmatpush1.bf16.msra.mxu0 %v686
        %720 = vmatprep.subr.bf16.mxu0 0
        %721 = vmatpush1.bf16.msra.mxu0 %v687
        %722 = vmatprep.subr.bf16.mxu0 0
        %723 = vmatpush1.bf16.msra.mxu0 %v688
        %724 = vmatprep.subr.bf16.mxu0 0
        %725 = vmatpush1.bf16.msra.mxu0 %v689
        %726 = vmatprep.subr.bf16.mxu0 0
        %727 = vmatpush1.bf16.msra.mxu0 %v690
        %728 = vmatprep.subr.bf16.mxu0 0
        %729 = vmatpush1.bf16.msra.mxu0 %v691
        %730 = vmatprep.subr.bf16.mxu0 0
        %731 = vmatpush1.bf16.msra.mxu0 %v692
        %732 = vmatprep.subr.bf16.mxu0 0
        %733 = vmatpush1.bf16.msra.mxu0 %v693
        %734 = vmatprep.subr.bf16.mxu0 0
        %735 = vmatpush1.bf16.msra.mxu0 %v694
        %736 = vmatprep.subr.bf16.mxu0 0
        %737 = vmatpush1.bf16.msra.mxu0 %v695
        %738 = vmatprep.subr.bf16.mxu0 0
        %739 = vmatpush1.bf16.msra.mxu0 %v696
        %740 = vmatprep.subr.bf16.mxu0 0
        %741 = vmatpush1.bf16.msra.mxu0 %v697
        %742 = vmatprep.subr.bf16.mxu0 0
        %743 = vmatpush1.bf16.msra.mxu0 %v698
        %744 = vmatprep.subr.bf16.mxu0 0
        %745 = vmatpush1.bf16.msra.mxu0 %v699
        %746 = vmatprep.subr.bf16.mxu0 0
        %747 = vmatpush1.bf16.msra.mxu0 %v700
        %748 = vmatprep.subr.bf16.mxu0 0
        %749 = vmatpush1.bf16.msra.mxu0 %v701
        %750 = vmatprep.mubr.bf16.mxu0 %v582
        %751 = vmatmul.mubr.bf16.gmra.mrb[0].mxu0 %v581
        %v752 = vpop.f32.mrb[0].mxu0
        %v753 = vadd.f32 %v620, %v752
        %v754 = vpop.f32.mrb[0].mxu0
        %v755 = vpop.f32.mrb[0].mxu0
        %v756 = vadd.f32 %v620, %v755
        %v757 = vpop.f32.mrb[0].mxu0
        %758 = vdwg.mxu0
        %v759 = vlaneseq
        %v760 = vand.u32 %v759, 127
        %vm761 = vcmp.lt.s32.totalorder %v760, 6
        %v762 = vsel %vm761, %v753, -1e+30
        %v763 = vsel %vm761, %v756, -1e+30
        %764 = vmax.xlane.f32.xlu0 %v762
        %v765 = vpop.xlane.xlu0 %764
        %766 = vmax.xlane.f32.xlu0 %v763
        %v767 = vpop.xlane.xlu0 %766
        %v768 = vsub.f32 %v762, %v765
        %v769 = vsub.f32 %v763, %v767
        %v770 = vmul.f32 %v768, 1.442695
        %v771 = vpow.pop %v770
        %v772 = vmul.f32 %v769, 1.442695
        %v773 = vpow.pop %v772
        %774 = vadd.xlane.f32.xlu0 %v771
        %v775 = vpop.xlane.xlu0 %774
        %776 = vadd.xlane.f32.xlu0 %v773
        %v777 = vpop.xlane.xlu0 %776
        %v778 = vrcp.pop %v775
        %v779 = vmul.f32 %v771, %v778
        %v780 = vrcp.pop %v777
        %v781 = vmul.f32 %v773, %v780
        %v782 = vpack.c.bf16 %v781, %v779
        %v784 = vunpack.c.l.b16 %v782
        %v785 = vunpack.c.h.b16 %v782
        %v786 = vpack.c.b16 %v784, %v784
        %v787 = vpack.c.b16 %v785, %v785
        %790 = vst [vmem:[%s330] sm:$0xf] %v786
        %791 = vst [vmem:[%s330 + $0x4] sm:$0xf] %v787
        %794 = vrot.lane.b32.xlu0 %v753, 122
        %v795 = vpop.permute.xlu0 %794
        %796 = vrot.lane.b32.xlu0 %v756, 122
        %v797 = vpop.permute.xlu0 %796
        %vm800 = vcmask 7168
        %801 = vst.msk [vmem:[%s349] sm:$0xff] %vm800, %v795
        %802 = vst.msk [vmem:[%s349 + $0x8] sm:$0xff] %vm800, %v797
        %s803 = sand.u32 %s185, 1
        %s804 = scalar_lea.sflag [#allocation4], %s803
        %s805 = sand.u32 %s185, 1
        %s806 = smul.addr %s805, 8
        %s807 = scalar_lea.vmem [#allocation7], %s806
        %s808 = smul.u32 2, %s25
        %p809 = scmp.lt.s32.totalorder %s808, 3
        %s810 = scalar_select %p809, %s808, 3
        %s811 = smul.addr %s810, 8
        %s812 = scalar_lea.vmem %s8, %s811
        // Predicated region
        $region57: #{tpu_custom_call.1} parent=47 // pred_check
          %p813 = pneg %p195
        $region58: #{tpu_custom_call.1} parent=47 // pred_check_branch
          %815 = sbr.rel (%p813) target = $region60
        $region59: #{tpu_custom_call.1} parent=47 // pred_region
          %s816 = smul.u32 2, %s25
          %s818 = ssub.s32 128, 128
          %819 = vsyncadd %s804, %s818
          %s820 = smul.addr %s816, 64
          %s821 = scalar_lea.hbm %s7, %s820
          %s822 = sshll.u32 %s807, 4
          %s823 = int_to_ptr.vmem [resolvable:$true] %s822
          %828 = dma.vmem_to_hbm [thread:$0]  %s823, 128, %s821, %s804, 64, 64, 4
        $region60: #{tpu_custom_call.1} parent=47 // pred_fallthru
          _
        // Predicated region
        $region61: #{tpu_custom_call.1} parent=47 // pred_check
          %p829 = pneg %p221
        $region62: #{tpu_custom_call.1} parent=47 // pred_check_branch
          %831 = sbr.rel (%p829) target = $region64
        $region63: #{tpu_custom_call.1} parent=47 // pred_region
          %s832 = smul.u32 2, %s25
        $region64: #{tpu_custom_call.1} parent=47 // pred_fallthru
          _
      $region48: #{tpu_custom_call.1} parent=5 // pred_fallthru
        _
      %p833 = scmp.le.s32.totalorder 2, %s20
      // Predicated region
      $region65: #{tpu_custom_call.1} parent=5 // pred_check
        %p834 = pneg %p833
      $region66: #{tpu_custom_call.1} parent=5 // pred_check_branch
        %836 = sbr.rel (%p834) target = $region68
      $region67: #{tpu_custom_call.1} parent=5 // pred_region
        %s837 = ssub.s32 %s20, 2
        // Predicated region
        $region69: #{tpu_custom_call.1} parent=67 // pred_check
          %p838 = pneg %p201
        $region70: #{tpu_custom_call.1} parent=67 // pred_check_branch
          %840 = sbr.rel (%p838) target = $region72
        $region71: #{tpu_custom_call.1} parent=67 // pred_region
          %s841 = sand.u32 %s186, 1
          %s842 = scalar_lea.sflag [#allocation4], %s841
          %s843 = sand.u32 %s186, 1
          %s844 = smul.addr %s843, 8
          %s845 = scalar_lea.vmem [#allocation7], %s844
          %846 = dma.done %s842, 128
        $region72: #{tpu_custom_call.1} parent=67 // pred_fallthru
          _
        // Predicated region
        $region73: #{tpu_custom_call.1} parent=67 // pred_check
          %p847 = pneg %p227
        $region74: #{tpu_custom_call.1} parent=67 // pred_check_branch
          %849 = sbr.rel (%p847) target = $region76
        $region75: #{tpu_custom_call.1} parent=67 // pred_region
          %s850 = smul.u32 2, %s26
          %p851 = scmp.lt.s32.totalorder %s850, 3
          %s852 = scalar_select %p851, %s850, 3
          %s853 = smul.addr %s852, 8
          %s854 = scalar_lea.vmem %s8, %s853
        $region76: #{tpu_custom_call.1} parent=67 // pred_fallthru
          _
      $region68: #{tpu_custom_call.1} parent=5 // pred_fallthru
        _
    $region6: #{tpu_custom_call.1} parent=1 // loop_footer
      %s24 = sadd.s32 1, %s20
    $region7: #{tpu_custom_call.1} parent=1 // loop_footer_branch
      %19 = sbr.rel target = $region3
    $region8: #{tpu_custom_call.1} parent=1 // loop_exit
      _
    %855 = vsyncpa [#allocation3], 1
    %s856 = scalar_lea.sflag [#allocation3], 1
    %857 = vsyncpa %s856, 1
    %858 = vsyncpa [#allocation6], 1
    %859 = vsyncpa [#allocation4], 1
    %s860 = scalar_lea.sflag [#allocation4], 1
    %861 = vsyncpa %s860, 1

</llo_original>
